<compile_context>
chip_gen: v7x
topology: tpu7x:2x2x1
jax: 0.10.0
libtpu: 0.0.40
codegen_flags: <defaults>
</compile_context>

<pallas_src>
import functools

import jax
import jax.numpy as jnp
from jax.experimental import pallas as pl
from jax.experimental.pallas import tpu as pltpu


_VMEM_TILE_BUDGET = 12 * 1024 * 1024   # bytes allowed for the row tiles (~4 live f32 bufs)
_VMEM_LIMIT_BYTES = 48 * 1024 * 1024   # scoped VMEM request (safe on v5e/v6e/v7x)


# ----------------------------- Pallas kernels ------------------------------ #

def stats_kernel(x_ref, m0_ref, s1_ref, s2_ref, viol_ref,
                 s1_acc, s2_acc, viol_acc,
                 *, tile, sub, n_valid, check_one_hot):
    """Mean-shifted per-lane sum / sum-of-squares / one-hot-violation."""
    i = pl.program_id(0)

    @pl.when(i == 0)
    def _init():
        s1_acc[...] = jnp.zeros_like(s1_acc)
        s2_acc[...] = jnp.zeros_like(s2_acc)
        viol_acc[...] = jnp.zeros_like(viol_acc)

    x = x_ref[...].astype(jnp.float32)
    dp = x.shape[-1]
    xc = x - m0_ref[...]                     # shift by running mean (conditioning)

    needs_mask = (n_valid % tile) != 0       # static: only a padded tail needs it
    if needs_mask:
        rows = i * tile + jax.lax.broadcasted_iota(jnp.int32, (tile, dp), 0)
        valid = rows < n_valid
        xc = jnp.where(valid, xc, 0.0)

    # accumulate with VPU elementwise adds into (sub, dp); no per-tile XLU reduce
    xr = xc.reshape(tile // sub, sub, dp)
    s1_acc[...] += jnp.sum(xr, axis=0)
    s2_acc[...] += jnp.sum(xr * xr, axis=0)

    if check_one_hot:
        v = (x != 0.0) & (x != 1.0) & (x != -1.0)
        if needs_mask:
            v = v & valid
        vf = v.astype(jnp.float32).reshape(tile // sub, sub, dp)
        viol_acc[...] = jnp.maximum(viol_acc[...], jnp.max(vf, axis=0))

    @pl.when(i == pl.num_programs(0) - 1)
    def _finish():
        s1_ref[...] = jnp.sum(s1_acc[...], axis=0, keepdims=True)
        s2_ref[...] = jnp.sum(s2_acc[...], axis=0, keepdims=True)
        viol_ref[...] = jnp.max(viol_acc[...], axis=0, keepdims=True)


def norm_kernel(x_ref, scale_ref, shift_ref, o_ref):
    """o = clip(x * scale - shift, -10, 10); scale/shift precomputed per lane."""
    y = x_ref[...].astype(jnp.float32) * scale_ref[...] - shift_ref[...]
    o_ref[...] = jnp.clip(y, -10.0, 10.0).astype(o_ref.dtype)


# ------------------------------ helpers ------------------------------------ #

def _fold_factor(n, d):
    """Largest g dividing n with g*d <= 128 (lane-pack small feature dims)."""
    if d >= 128 or n <= 1:
        return 1
    for g in range(min(n, 128 // d), 0, -1):
        if n % g == 0:
            return g
    return 1


def _pick_tile(n_rows, dp, requested):
    """Largest row tile (multiple of 8) fitting the conservative VMEM budget."""
    per_row = dp * 4 * 4                     # ~4 live f32 buffers per row
    cap = max(8, (_VMEM_TILE_BUDGET // per_row) // 8 * 8)
    if n_rows < 8:
        return n_rows                        # full-array block (grid of 1)
    tile = min(requested, cap, (n_rows // 8) * 8)
    return max(8, (tile // 8) * 8)


# ------------------------------ wrappers ----------------------------------- #

def _batch_stats(xp, m0p, tile_n, check_one_hot):
    n, dp = xp.shape
    tile = _pick_tile(n, dp, tile_n)
    sub = 8 if tile % 8 == 0 else 1
    grid = (pl.cdiv(n, tile),)
    kernel = functools.partial(stats_kernel, tile=tile, sub=sub,
                               n_valid=n, check_one_hot=check_one_hot)
    out_shape = tuple(jax.ShapeDtypeStruct((1, dp), jnp.float32) for _ in range(3))
    acc_spec = pl.BlockSpec((1, dp), lambda i: (0, 0))
    s1, s2, viol = pl.pallas_call(
        kernel,
        out_shape=out_shape,
        grid_spec=pltpu.PrefetchScalarGridSpec(
            num_scalar_prefetch=0,
            grid=grid,
            in_specs=[pl.BlockSpec((tile, dp), lambda i: (i, 0)),
                      pl.BlockSpec((1, dp), lambda i: (0, 0))],
            out_specs=[acc_spec, acc_spec, acc_spec],
            scratch_shapes=[pltpu.VMEM((sub, dp), jnp.float32)] * 3),
        compiler_params=pltpu.CompilerParams(
            dimension_semantics=("arbitrary",),
            vmem_limit_bytes=_VMEM_LIMIT_BYTES),
    )(xp, m0p)
    # TODO(synk): on v7x a leading 2-way "parallel" grid axis over row halves
    # (with a (2, dp) accumulator output) would use both TensorCores for stats.
    return s1[0], s2[0], viol[0]


def _normalize(xp, scalep, shiftp, tile_n):
    n, dp = xp.shape
    tile = _pick_tile(n, dp, tile_n)
    grid = (pl.cdiv(n, tile),)
    return pl.pallas_call(
        norm_kernel,
        out_shape=jax.ShapeDtypeStruct((n, dp), xp.dtype),
        grid_spec=pltpu.PrefetchScalarGridSpec(
            num_scalar_prefetch=0,
            grid=grid,
            in_specs=[pl.BlockSpec((tile, dp), lambda i: (i, 0)),
                      pl.BlockSpec((1, dp), lambda i: (0, 0)),
                      pl.BlockSpec((1, dp), lambda i: (0, 0))],
            out_specs=pl.BlockSpec((tile, dp), lambda i: (i, 0)),
        ),
        compiler_params=pltpu.CompilerParams(
            dimension_semantics=("parallel",),
            vmem_limit_bytes=_VMEM_LIMIT_BYTES),
    )(xp, scalep, shiftp)


def init_dynamic_norm_state(input_size):
    """Deterministic init matching the PyTorch __init__ (zeros/ones)."""
    return {
        "mean": jnp.zeros((input_size,), jnp.float32),
        "var": jnp.ones((input_size,), jnp.float32),
        "n_sample": jnp.zeros((1,), jnp.int32),
        "one_hot_filter": jnp.ones((input_size,), jnp.bool_),
    }


@functools.partial(jax.jit, static_argnames=("training", "exclude_one_hot", "tile_n"))
def dynamic_norm_forward(state, x, *, training=True, exclude_one_hot=True, tile_n=1024):
    """Forward pass of DynamicNorm (only_for_last_dim=True, exclude_nan=False).

    Returns (normalized_x, new_state)."""
    d = x.shape[-1]
    x2d = x.reshape(-1, d)                   # keep original dtype; kernels upcast
    n = x2d.shape[0]
    # TODO(synk): exclude_nan row filtering (dynamic valid-row count) not handled.

    # lane-pack small feature dims: (N, D) -> (N/g, g*D), free (contiguous) reshape
    g = _fold_factor(n, d)
    dp = g * d
    xp = x2d.reshape(n // g, dp)

    mean = state["mean"]
    var = state["var"]
    n_sample = state["n_sample"]
    one_hot_filter = state["one_hot_filter"]

    if training:
        m0p = jnp.tile(mean.astype(jnp.float32), g).reshape(1, dp)
        s1p, s2p, violp = _batch_stats(xp, m0p, tile_n, exclude_one_hot)
        s1 = s1p.reshape(g, d).sum(axis=0)
        s2 = s2p.reshape(g, d).sum(axis=0)
        viol = violp.reshape(g, d).max(axis=0)

        nf = jnp.float32(n)
        d1 = s1 / nf                         # batch_mean - running_mean (shifted)
        batch_mean = mean + d1
        batch_var = jnp.maximum(s2 / nf - d1 * d1, 0.0)

        # Chan parallel-variance combine (tiny O(D) glue)
        n_old = n_sample[0].astype(jnp.float32)
        delta = batch_mean - mean
        tot = n_old + nf
        new_mean = mean + delta * nf / tot
        m2 = var * n_old + batch_var * nf + jnp.square(delta) * n_old * nf / tot
        new_var_clip = jnp.clip(m2 / tot, 0.01, 1000.0)

        if exclude_one_hot:
            one_hot_filter = one_hot_filter & (viol == 0.0)
            mean = jnp.where(one_hot_filter, mean, new_mean)
            var = jnp.where(one_hot_filter, var, new_var_clip)
        else:
            mean = new_mean
            var = new_var_clip
        # TODO(synk): n_sample is int32 (JAX default); can overflow on very long runs.
        n_sample = n_sample + jnp.int32(n)

    scale = jax.lax.rsqrt(var.astype(jnp.float32) + 1e-8)
    shift = mean.astype(jnp.float32) * scale
    scalep = jnp.tile(scale, g).reshape(1, dp)
    shiftp = jnp.tile(shift, g).reshape(1, dp)

    y = _normalize(xp, scalep, shiftp, tile_n).reshape(x.shape)

    new_state = {
        "mean": mean,
        "var": var,
        "n_sample": n_sample,
        "one_hot_filter": one_hot_filter,
    }
    return y, new_state


# ------------------------------ reference ---------------------------------- #

def _reference(state, x, training=True, exclude_one_hot=True):
    d = x.shape[-1]
    x2d = x.reshape(-1, d).astype(jnp.float32)
    n = x2d.shape[0]
    mean, var = state["mean"], state["var"]
    ohf = state["one_hot_filter"]
    n_old = state["n_sample"][0].astype(jnp.float32)
    if training:
        bm = jnp.mean(x2d, axis=0)
        bv = jnp.var(x2d, axis=0)
        delta = bm - mean
        tot = n_old + n
        new_mean = mean + delta * n / tot
        m2 = var * n_old + bv * n + jnp.square(delta) * n_old * n / tot
        new_var = jnp.clip(m2 / tot, 0.01, 1000.0)
        if exclude_one_hot:
            ohf = ohf & ~((x2d != 0) & (x2d != 1) & (x2d != -1)).any(axis=0)
            mean = jnp.where(ohf, state["mean"], new_mean)
            var = jnp.where(ohf, state["var"], new_var)
        else:
            mean, var = new_mean, new_var
    y = jnp.clip((x - mean) / jnp.sqrt(var + 1e-8), -10.0, 10.0)
    return y, mean, var


# --------------------------------- main ------------------------------------ #

if __name__ == "__main__":
    key = jax.random.PRNGKey(0)
    k1, k2 = jax.random.split(key)

    batch, seq, hidden = 2, 8, 32            # x: (2, 8, 32), input_size = 32
    x = jax.random.normal(k1, (batch, seq, hidden), dtype=jnp.float32)
    # make a couple of columns look one-hot-like (values only in {0, 1})
    onehot_cols = (jax.random.uniform(k2, (batch, seq, 2)) > 0.5).astype(jnp.float32)
    x = x.at[..., :2].set(onehot_cols)

    state = init_dynamic_norm_state(hidden)

    # first call: fresh state
    y, new_state = dynamic_norm_forward(state, x, training=True)
    y = jax.block_until_ready(y)
    y_ref, mean_ref, var_ref = _reference(state, x, training=True)
    assert jnp.allclose(y, y_ref, atol=1e-4, rtol=1e-4), "y mismatch (call 1)"
    assert jnp.allclose(new_state["mean"], mean_ref, atol=1e-5, rtol=1e-5)
    assert jnp.allclose(new_state["var"], var_ref, atol=1e-5, rtol=1e-5)
    assert int(new_state["n_sample"][0]) == batch * seq

    # second call: non-zero running stats, one-hot columns break the filter
    x2 = x * 2.0 + 0.5
    y2, state2 = dynamic_norm_forward(new_state, x2, training=True)
    y2 = jax.block_until_ready(y2)
    y2_ref, mean2_ref, var2_ref = _reference(new_state, x2, training=True)
    assert jnp.allclose(y2, y2_ref, atol=1e-4, rtol=1e-4), "y mismatch (call 2)"
    assert jnp.allclose(state2["mean"], mean2_ref, atol=1e-4, rtol=1e-4)
    assert jnp.allclose(state2["var"], var2_ref, atol=1e-4, rtol=1e-4)
    assert int(state2["n_sample"][0]) == 2 * batch * seq

    print("KERNEL_OK")
</pallas_src>

<mosaic_0001>
module attributes {stable_mosaic.version = 11 : i64} {
  func.func @stats_kernel(%arg0: i32, %arg1: memref<4x128xf32, #tpu.memory_space<vmem>>, %arg2: memref<1x128xf32, #tpu.memory_space<vmem>>, %arg3: memref<1x128xf32, #tpu.memory_space<vmem>>, %arg4: memref<1x128xf32, #tpu.memory_space<vmem>>, %arg5: memref<1x128xf32, #tpu.memory_space<vmem>>, %arg6: memref<1x128xf32, #tpu.memory_space<vmem>>, %arg7: memref<1x128xf32, #tpu.memory_space<vmem>>, %arg8: memref<1x128xf32, #tpu.memory_space<vmem>>) attributes {dimension_semantics = [#tpu.dimension_semantics<arbitrary>], iteration_bounds = array<i64: 1>, scalar_prefetch = 0 : i64, scratch_operands = 3 : i64, tpu.core_type = #tpu.core_type<tc>, window_params = [{transform_indices = @transform_0, window_bounds = array<i64: 4, 128>}, {pipeline_mode = #tpu.pipeline_mode<synchronous>, transform_indices = @transform_1, window_bounds = array<i64: 1, 128>}, {pipeline_mode = #tpu.pipeline_mode<synchronous>, transform_indices = @transform_2, window_bounds = array<i64: 1, 128>}, {pipeline_mode = #tpu.pipeline_mode<synchronous>, transform_indices = @transform_3, window_bounds = array<i64: 1, 128>}, {pipeline_mode = #tpu.pipeline_mode<synchronous>, transform_indices = @transform_4, window_bounds = array<i64: 1, 128>}]} {
    %c0_i32 = arith.constant 0 : i32
    %0 = arith.cmpi eq, %arg0, %c0_i32 : i32
    %1 = arith.extui %0 : i1 to i32
    %c0_i32_0 = arith.constant 0 : i32
    %2 = arith.cmpi ne, %1, %c0_i32_0 : i32
    scf.if %2 {
      %cst_23 = arith.constant 0.000000e+00 : f32
      %35 = vector.broadcast %cst_23 : f32 to vector<1x128xf32>
      %c0_24 = arith.constant 0 : index
      %c0_25 = arith.constant 0 : index
      %36 = vector.load %arg6[%c0_24, %c0_25] : memref<1x128xf32, #tpu.memory_space<vmem>>, vector<1x128xf32>
      tpu.vector_store %arg6[%c0_24, %c0_25], %35 {strides = array<i32>} : memref<1x128xf32, #tpu.memory_space<vmem>>, vector<1x128xf32>,
      %cst_26 = arith.constant 0.000000e+00 : f32
      %37 = vector.broadcast %cst_26 : f32 to vector<1x128xf32>
      %c0_27 = arith.constant 0 : index
      %c0_28 = arith.constant 0 : index
      %38 = vector.load %arg7[%c0_27, %c0_28] : memref<1x128xf32, #tpu.memory_space<vmem>>, vector<1x128xf32>
      tpu.vector_store %arg7[%c0_27, %c0_28], %37 {strides = array<i32>} : memref<1x128xf32, #tpu.memory_space<vmem>>, vector<1x128xf32>,
      %cst_29 = arith.constant 0.000000e+00 : f32
      %39 = vector.broadcast %cst_29 : f32 to vector<1x128xf32>
      %c0_30 = arith.constant 0 : index
      %c0_31 = arith.constant 0 : index
      %40 = vector.load %arg8[%c0_30, %c0_31] : memref<1x128xf32, #tpu.memory_space<vmem>>, vector<1x128xf32>
      tpu.vector_store %arg8[%c0_30, %c0_31], %39 {strides = array<i32>} : memref<1x128xf32, #tpu.memory_space<vmem>>, vector<1x128xf32>,
    } else {
    }
    %c0 = arith.constant 0 : index
    %c0_1 = arith.constant 0 : index
    %3 = vector.load %arg1[%c0, %c0_1] : memref<4x128xf32, #tpu.memory_space<vmem>>, vector<4x128xf32>
    %c0_2 = arith.constant 0 : index
    %c0_3 = arith.constant 0 : index
    %4 = vector.load %arg2[%c0_2, %c0_3] : memref<1x128xf32, #tpu.memory_space<vmem>>, vector<1x128xf32>
    %5 = vector.broadcast %4 : vector<1x128xf32> to vector<4x128xf32>
    %6 = arith.subf %3, %5 : vector<4x128xf32>
    %7 = vector.shape_cast %6 : vector<4x128xf32> to vector<4x1x128xf32>
    %c0_4 = arith.constant 0 : index
    %c0_5 = arith.constant 0 : index
    %8 = vector.load %arg6[%c0_4, %c0_5] : memref<1x128xf32, #tpu.memory_space<vmem>>, vector<1x128xf32>
    %cst = arith.constant dense<0.000000e+00> : vector<1x128xf32>
    %9 = vector.multi_reduction <add>, %7, %cst [0] : vector<4x1x128xf32> to vector<1x128xf32>
    %10 = arith.addf %8, %9 : vector<1x128xf32>
    %c0_6 = arith.constant 0 : index
    %c0_7 = arith.constant 0 : index
    %11 = vector.load %arg6[%c0_6, %c0_7] : memref<1x128xf32, #tpu.memory_space<vmem>>, vector<1x128xf32>
    tpu.vector_store %arg6[%c0_6, %c0_7], %10 {strides = array<i32>} : memref<1x128xf32, #tpu.memory_space<vmem>>, vector<1x128xf32>,
    %c0_8 = arith.constant 0 : index
    %c0_9 = arith.constant 0 : index
    %12 = vector.load %arg7[%c0_8, %c0_9] : memref<1x128xf32, #tpu.memory_space<vmem>>, vector<1x128xf32>
    %13 = arith.mulf %7, %7 : vector<4x1x128xf32>
    %cst_10 = arith.constant dense<0.000000e+00> : vector<1x128xf32>
    %14 = vector.multi_reduction <add>, %13, %cst_10 [0] : vector<4x1x128xf32> to vector<1x128xf32>
    %15 = arith.addf %12, %14 : vector<1x128xf32>
    %c0_11 = arith.constant 0 : index
    %c0_12 = arith.constant 0 : index
    %16 = vector.load %arg7[%c0_11, %c0_12] : memref<1x128xf32, #tpu.memory_space<vmem>>, vector<1x128xf32>
    tpu.vector_store %arg7[%c0_11, %c0_12], %15 {strides = array<i32>} : memref<1x128xf32, #tpu.memory_space<vmem>>, vector<1x128xf32>,
    %cst_13 = arith.constant 0.000000e+00 : f32
    %17 = vector.broadcast %cst_13 : f32 to vector<4x128xf32>
    %18 = arith.cmpf one, %3, %17 : vector<4x128xf32>
    %cst_14 = arith.constant 1.000000e+00 : f32
    %19 = vector.broadcast %cst_14 : f32 to vector<4x128xf32>
    %20 = arith.cmpf one, %3, %19 : vector<4x128xf32>
    %21 = arith.andi %18, %20 : vector<4x128xi1>
    %cst_15 = arith.constant -1.000000e+00 : f32
    %22 = vector.broadcast %cst_15 : f32 to vector<4x128xf32>
    %23 = arith.cmpf one, %3, %22 : vector<4x128xf32>
    %24 = arith.andi %21, %23 : vector<4x128xi1>
    %25 = arith.extui %24 : vector<4x128xi1> to vector<4x128xi32>
    %26 = arith.sitofp %25 : vector<4x128xi32> to vector<4x128xf32>
    %27 = vector.shape_cast %26 : vector<4x128xf32> to vector<4x1x128xf32>
    %c0_16 = arith.constant 0 : index
    %c0_17 = arith.constant 0 : index
    %28 = vector.load %arg8[%c0_16, %c0_17] : memref<1x128xf32, #tpu.memory_space<vmem>>, vector<1x128xf32>
    %cst_18 = arith.constant dense<0xFF800000> : vector<1x128xf32>
    %29 = vector.multi_reduction <maximumf>, %27, %cst_18 [0] : vector<4x1x128xf32> to vector<1x128xf32>
    %30 = arith.maximumf %28, %29 : vector<1x128xf32>
    %c0_19 = arith.constant 0 : index
    %c0_20 = arith.constant 0 : index
    %31 = vector.load %arg8[%c0_19, %c0_20] : memref<1x128xf32, #tpu.memory_space<vmem>>, vector<1x128xf32>
    tpu.vector_store %arg8[%c0_19, %c0_20], %30 {strides = array<i32>} : memref<1x128xf32, #tpu.memory_space<vmem>>, vector<1x128xf32>,
    %c0_i32_21 = arith.constant 0 : i32
    %32 = arith.cmpi eq, %arg0, %c0_i32_21 : i32
    %33 = arith.extui %32 : i1 to i32
    %c0_i32_22 = arith.constant 0 : i32
    %34 = arith.cmpi ne, %33, %c0_i32_22 : i32
    scf.if %34 {
      %c0_23 = arith.constant 0 : index
      %c0_24 = arith.constant 0 : index
      %35 = vector.load %arg6[%c0_23, %c0_24] : memref<1x128xf32, #tpu.memory_space<vmem>>, vector<1x128xf32>
      %cst_25 = arith.constant dense<0.000000e+00> : vector<128xf32>
      %36 = vector.multi_reduction <add>, %35, %cst_25 [0] : vector<1x128xf32> to vector<128xf32>
      %37 = vector.shape_cast %36 : vector<128xf32> to vector<1x128xf32>
      %c0_26 = arith.constant 0 : index
      %c0_27 = arith.constant 0 : index
      %38 = vector.load %arg3[%c0_26, %c0_27] : memref<1x128xf32, #tpu.memory_space<vmem>>, vector<1x128xf32>
      tpu.vector_store %arg3[%c0_26, %c0_27], %37 {strides = array<i32>} : memref<1x128xf32, #tpu.memory_space<vmem>>, vector<1x128xf32>,
      %c0_28 = arith.constant 0 : index
      %c0_29 = arith.constant 0 : index
      %39 = vector.load %arg7[%c0_28, %c0_29] : memref<1x128xf32, #tpu.memory_space<vmem>>, vector<1x128xf32>
      %cst_30 = arith.constant dense<0.000000e+00> : vector<128xf32>
      %40 = vector.multi_reduction <add>, %39, %cst_30 [0] : vector<1x128xf32> to vector<128xf32>
      %41 = vector.shape_cast %40 : vector<128xf32> to vector<1x128xf32>
      %c0_31 = arith.constant 0 : index
      %c0_32 = arith.constant 0 : index
      %42 = vector.load %arg4[%c0_31, %c0_32] : memref<1x128xf32, #tpu.memory_space<vmem>>, vector<1x128xf32>
      tpu.vector_store %arg4[%c0_31, %c0_32], %41 {strides = array<i32>} : memref<1x128xf32, #tpu.memory_space<vmem>>, vector<1x128xf32>,
      %c0_33 = arith.constant 0 : index
      %c0_34 = arith.constant 0 : index
      %43 = vector.load %arg8[%c0_33, %c0_34] : memref<1x128xf32, #tpu.memory_space<vmem>>, vector<1x128xf32>
      %cst_35 = arith.constant dense<0xFF800000> : vector<128xf32>
      %44 = vector.multi_reduction <maximumf>, %43, %cst_35 [0] : vector<1x128xf32> to vector<128xf32>
      %45 = vector.shape_cast %44 : vector<128xf32> to vector<1x128xf32>
      %c0_36 = arith.constant 0 : index
      %c0_37 = arith.constant 0 : index
      %46 = vector.load %arg5[%c0_36, %c0_37] : memref<1x128xf32, #tpu.memory_space<vmem>>, vector<1x128xf32>
      tpu.vector_store %arg5[%c0_36, %c0_37], %45 {strides = array<i32>} : memref<1x128xf32, #tpu.memory_space<vmem>>, vector<1x128xf32>,
    } else {
    }
    return
  }
  func.func @transform_0(%arg0: i32) -> (i32, i32) {
    %c0_i32 = arith.constant 0 : i32
    %c0_i32_0 = arith.constant 0 : i32
    return %arg0, %c0_i32 : i32, i32
  }
  func.func @transform_1(%arg0: i32) -> (i32, i32) {
    %c0_i32 = arith.constant 0 : i32
    %c0_i32_0 = arith.constant 0 : i32
    %c0_i32_1 = arith.constant 0 : i32
    return %c0_i32, %c0_i32_0 : i32, i32
  }
  func.func @transform_2(%arg0: i32) -> (i32, i32) {
    %c0_i32 = arith.constant 0 : i32
    %c0_i32_0 = arith.constant 0 : i32
    %c0_i32_1 = arith.constant 0 : i32
    return %c0_i32, %c0_i32_0 : i32, i32
  }
  func.func @transform_3(%arg0: i32) -> (i32, i32) {
    %c0_i32 = arith.constant 0 : i32
    %c0_i32_0 = arith.constant 0 : i32
    %c0_i32_1 = arith.constant 0 : i32
    return %c0_i32, %c0_i32_0 : i32, i32
  }
  func.func @transform_4(%arg0: i32) -> (i32, i32) {
    %c0_i32 = arith.constant 0 : i32
    %c0_i32_0 = arith.constant 0 : i32
    %c0_i32_1 = arith.constant 0 : i32
    return %c0_i32, %c0_i32_0 : i32, i32
  }
}

module attributes {stable_mosaic.version = 11 : i64} {
  func.func @norm_kernel(%arg0: i32, %arg1: memref<4x128xf32, #tpu.memory_space<vmem>>, %arg2: memref<1x128xf32, #tpu.memory_space<vmem>>, %arg3: memref<1x128xf32, #tpu.memory_space<vmem>>, %arg4: memref<4x128xf32, #tpu.memory_space<vmem>>) attributes {dimension_semantics = [#tpu.dimension_semantics<parallel>], iteration_bounds = array<i64: 1>, scalar_prefetch = 0 : i64, scratch_operands = 0 : i64, tpu.core_type = #tpu.core_type<tc>, window_params = [{transform_indices = @transform_0, window_bounds = array<i64: 4, 128>}, {pipeline_mode = #tpu.pipeline_mode<synchronous>, transform_indices = @transform_1, window_bounds = array<i64: 1, 128>}, {pipeline_mode = #tpu.pipeline_mode<synchronous>, transform_indices = @transform_2, window_bounds = array<i64: 1, 128>}, {transform_indices = @transform_3, window_bounds = array<i64: 4, 128>}]} {
    %c0 = arith.constant 0 : index
    %c0_0 = arith.constant 0 : index
    %0 = vector.load %arg1[%c0, %c0_0] : memref<4x128xf32, #tpu.memory_space<vmem>>, vector<4x128xf32>
    %c0_1 = arith.constant 0 : index
    %c0_2 = arith.constant 0 : index
    %1 = vector.load %arg2[%c0_1, %c0_2] : memref<1x128xf32, #tpu.memory_space<vmem>>, vector<1x128xf32>
    %2 = vector.broadcast %1 : vector<1x128xf32> to vector<4x128xf32>
    %3 = arith.mulf %0, %2 : vector<4x128xf32>
    %c0_3 = arith.constant 0 : index
    %c0_4 = arith.constant 0 : index
    %4 = vector.load %arg3[%c0_3, %c0_4] : memref<1x128xf32, #tpu.memory_space<vmem>>, vector<1x128xf32>
    %5 = vector.broadcast %4 : vector<1x128xf32> to vector<4x128xf32>
    %6 = arith.subf %3, %5 : vector<4x128xf32>
    %cst = arith.constant -1.000000e+01 : f32
    %cst_5 = arith.constant 1.000000e+01 : f32
    %7 = vector.broadcast %cst : f32 to vector<4x128xf32>
    %8 = arith.maximumf %7, %6 : vector<4x128xf32>
    %9 = vector.broadcast %cst_5 : f32 to vector<4x128xf32>
    %10 = arith.minimumf %9, %8 : vector<4x128xf32>
    %c0_6 = arith.constant 0 : index
    %c0_7 = arith.constant 0 : index
    %11 = vector.load %arg4[%c0_6, %c0_7] : memref<4x128xf32, #tpu.memory_space<vmem>>, vector<4x128xf32>
    tpu.vector_store %arg4[%c0_6, %c0_7], %10 {strides = array<i32>} : memref<4x128xf32, #tpu.memory_space<vmem>>, vector<4x128xf32>,
    return
  }
  func.func @transform_0(%arg0: i32) -> (i32, i32) {
    %c0_i32 = arith.constant 0 : i32
    %c0_i32_0 = arith.constant 0 : i32
    return %arg0, %c0_i32 : i32, i32
  }
  func.func @transform_1(%arg0: i32) -> (i32, i32) {
    %c0_i32 = arith.constant 0 : i32
    %c0_i32_0 = arith.constant 0 : i32
    %c0_i32_1 = arith.constant 0 : i32
    return %c0_i32, %c0_i32_0 : i32, i32
  }
  func.func @transform_2(%arg0: i32) -> (i32, i32) {
    %c0_i32 = arith.constant 0 : i32
    %c0_i32_0 = arith.constant 0 : i32
    %c0_i32_1 = arith.constant 0 : i32
    return %c0_i32, %c0_i32_0 : i32, i32
  }
  func.func @transform_3(%arg0: i32) -> (i32, i32) {
    %c0_i32 = arith.constant 0 : i32
    %c0_i32_0 = arith.constant 0 : i32
    return %arg0, %c0_i32 : i32, i32
  }
}

</mosaic_0001>

<llo_original>
// kernel: tile.19
$region0: #{tile.19}
  %s0 = inlined_call_operand.vmem [shape: f32[4,32], index: 0, kind: input, shape index: {}]
  %s1 = inlined_call_operand.vmem [shape: f32[1,128], index: 1, kind: output, shape index: {}]
  $region1: #{tile.19} parent=0
    #allocation0 [shape = 'u8[4096]{0}', space=vmem, size = 0x1000, scoped, tag = 'scoped mem for output reshape']
    #allocation1 [shape = 'u8[4096]{0}', space=vmem, size = 0x1000, scoped, tag = 'scoped mem for input reshape']
    %s3 = sshllo.u32 0, 4
    %v4 = vld [vmem:[%s0] sm:%s3]
    %5 = vst [vmem:[#allocation1] sm:%s3] %v4
    %v6 = vld [vmem:[#allocation1] sm:$0x1]
    %vm7 = vcmask 261120
    %8 = vst.msk [vmem:[#allocation0] sm:$0x1] %vm7, %v6
    %s9 = scalar_lea.vmem [#allocation1], 3
    %v10 = vld [vmem:[%s9] sm:$0x1]
    %11 = vrot.lane.b32.xlu0 %v10, 96
    %v12 = vpop.permute.xlu0 %11
    %vm13 = vcmask 1048320
    %14 = vst.msk [vmem:[#allocation0] sm:$0x1] %vm13, %v12
    %s15 = scalar_lea.vmem [#allocation1], 2
    %v16 = vld [vmem:[%s15] sm:$0x1]
    %17 = vrot.lane.b32.xlu0 %v16, 64
    %v18 = vpop.permute.xlu0 %17
    %vm19 = vcmask 785920
    %20 = vst.msk [vmem:[#allocation0] sm:$0x1] %vm19, %v18
    %s21 = scalar_lea.vmem [#allocation1], 1
    %v22 = vld [vmem:[%s21] sm:$0x1]
    %23 = vrot.lane.b32.xlu0 %v22, 32
    %v24 = vpop.permute.xlu0 %23
    %vm25 = vcmask 523520
    %26 = vst.msk [vmem:[#allocation0] sm:$0x1] %vm25, %v24
    %s28 = sshllo.u32 0, 1
    %v30 = vld [vmem:[#allocation0] sm:%s28]
    %s31 = sshllo.u32 0, 1
    %32 = vst [vmem:[%s1] sm:%s31] %v30

// kernel: tile.18
$region0: #{tile.18}
  #allocation0 [shape = 's32[1]{0}', space=sflag, size = 0x4, scoped, tag = 'scoped memory for tile.18']
  %s0 = inlined_call_operand.vmem [shape: f32[32], index: 0, kind: input, shape index: {}]
  %s1 = inlined_call_operand.vmem [shape: f32[4,32], index: 1, kind: output, shape index: {}]
  // Predicated region
  $region2: #{tile.18} parent=0 // pred_check
    _
  $region3: #{tile.18} parent=0 // pred_check_branch
    %3 = sbr.rel (0) target = $region5
  $region4: #{tile.18} parent=0 // pred_region
    _
  $region5: #{tile.18} parent=0 // pred_fallthru
    _
  %v4 = vld [vmem:[%s0] ss:$0 sm:$0xff]
  %5 = vst [vmem:[%s1] sm:$0xf] %v4

// kernel: squeeze.4
$region0: #{squeeze.4}
  %s0 = inlined_call_operand.vmem [shape: f32[128], index: 0, kind: input, shape index: {}]
  %s1 = inlined_call_operand.vmem [shape: f32[4,32], index: 1, kind: output, shape index: {}]
  $region1: #{squeeze.4} parent=0
    #allocation0 [shape = 'u8[4096]{0}', space=vmem, size = 0x1000, scoped, tag = 'scoped mem for output reshape']
    #allocation1 [shape = 'u8[4096]{0}', space=vmem, size = 0x1000, scoped, tag = 'scoped mem for input reshape']
    %s3 = sshllo.u32 0, 1
    %v4 = vld [vmem:[%s0] sm:%s3]
    %5 = vst [vmem:[#allocation1] sm:%s3] %v4
    %v6 = vld [vmem:[#allocation1] sm:$0x1]
    %vm7 = vcmask 261120
    %8 = vst.msk [vmem:[#allocation0] sm:$0x1] %vm7, %v6
    %v9 = vld [vmem:[#allocation1] sm:$0x1]
    %10 = vrot.lane.b32.xlu0 %v9, 96
    %v11 = vpop.permute.xlu0 %10
    %vm12 = vcmask 261120
    %s13 = scalar_lea.vmem [#allocation0], 1
    %14 = vst.msk [vmem:[%s13] sm:$0x1] %vm12, %v11
    %v15 = vld [vmem:[#allocation1] sm:$0x1]
    %16 = vrot.lane.b32.xlu0 %v15, 64
    %v17 = vpop.permute.xlu0 %16
    %vm18 = vcmask 261120
    %s19 = scalar_lea.vmem [#allocation0], 2
    %20 = vst.msk [vmem:[%s19] sm:$0x1] %vm18, %v17
    %v21 = vld [vmem:[#allocation1] sm:$0x1]
    %22 = vrot.lane.b32.xlu0 %v21, 32
    %v23 = vpop.permute.xlu0 %22
    %vm24 = vcmask 261120
    %s25 = scalar_lea.vmem [#allocation0], 3
    %26 = vst.msk [vmem:[%s25] sm:$0x1] %vm24, %v23
    %s28 = sshllo.u32 0, 4
    %v30 = vld [vmem:[#allocation0] sm:%s28]
    %s31 = sshllo.u32 0, 4
    %32 = vst [vmem:[%s1] sm:%s31] %v30

</llo_original>
